<compile_context>
chip_gen: v7x
topology: tpu7x:2x2x1
jax: 0.10.0
libtpu: 0.0.40
codegen_flags: <defaults>
</compile_context>

<pallas_src>
import functools

import jax
import jax.numpy as jnp
from jax.experimental import pallas as pl
from jax.experimental.pallas import tpu as pltpu


def _round_up(x, m):
    return (x + m - 1) // m * m


# ----------------------------------------------------------------------------
# Pass 1 (batchnorm=True): conv-as-matmul + per-tile BN partial statistics.
# Output tile is bf16; stats come from the f32 accumulator before the cast.
# ----------------------------------------------------------------------------
def _conv_stats_kernel(p_ref, w_ref, y_ref, sum_ref, sq_ref, acc_ref):
    k = pl.program_id(2)

    @pl.when(k == 0)
    def _init():
        acc_ref[...] = jnp.zeros_like(acc_ref)

    # bf16 x bf16 -> f32 accumulation on the MXU.
    acc_ref[...] += jnp.dot(p_ref[...], w_ref[...],
                            preferred_element_type=jnp.float32)

    @pl.when(k == pl.num_programs(2) - 1)
    def _finalize():
        y = acc_ref[...]                                   # (TM, TN) f32
        # bf16 intermediate halves the HBM round-trip to pass 2.
        y_ref[...] = y.astype(y_ref.dtype)
        # Per-channel partial sums for BatchNorm batch statistics (f32, from
        # the accumulator). Padded rows of the patch matrix are zero, so they
        # contribute nothing.
        sum_ref[...] = jnp.sum(y, axis=0, keepdims=True).reshape(sum_ref.shape)
        sq_ref[...] = jnp.sum(y * y, axis=0, keepdims=True).reshape(sq_ref.shape)


# ----------------------------------------------------------------------------
# Single fused pass (batchnorm=False): conv matmul + bias + LeakyReLU.
# ----------------------------------------------------------------------------
def _conv_bias_act_kernel(p_ref, w_ref, b_ref, o_ref, acc_ref, *,
                          negative_slope, apply_act):
    k = pl.program_id(2)

    @pl.when(k == 0)
    def _init():
        acc_ref[...] = jnp.zeros_like(acc_ref)

    acc_ref[...] += jnp.dot(p_ref[...], w_ref[...],
                            preferred_element_type=jnp.float32)

    @pl.when(k == pl.num_programs(2) - 1)
    def _finalize():
        y = acc_ref[...] + b_ref[...]                      # (TM,TN) + (1,TN)
        if apply_act:
            y = jnp.where(y > 0, y, negative_slope * y)
        o_ref[...] = y.astype(o_ref.dtype)


# ----------------------------------------------------------------------------
# Pass 2 (batchnorm=True): fused per-channel scale/shift + LeakyReLU.
# ----------------------------------------------------------------------------
def _scale_act_kernel(y_ref, scale_ref, shift_ref, o_ref, *, negative_slope,
                      apply_act):
    y = y_ref[...].astype(jnp.float32) * scale_ref[...] + shift_ref[...]
    if apply_act:
        y = jnp.where(y > 0, y, negative_slope * y)
    o_ref[...] = y.astype(o_ref.dtype)


# ----------------------------------------------------------------------------
# JAX glue: im2col (bf16), tile selection, wrapper.
# ----------------------------------------------------------------------------
def _im2col(x, kernel, stride, padding):
    """x: [N, Cin, H, W] -> patches [N*Ho*Wo, Cin*KH*KW] (K order: c, kh, kw)."""
    n, c, h, w = x.shape
    ho = (h + 2 * padding - kernel) // stride + 1
    wo = (w + 2 * padding - kernel) // stride + 1
    xp = jnp.pad(x, ((0, 0), (0, 0), (padding, padding), (padding, padding)))
    cols = []
    for kh in range(kernel):
        for kw in range(kernel):
            cols.append(xp[:, :, kh:kh + stride * ho:stride,
                               kw:kw + stride * wo:stride])   # [N, C, Ho, Wo]
    patches = jnp.stack(cols, axis=2)                 # [N, C, KH*KW, Ho, Wo]
    patches = patches.transpose(0, 3, 4, 1, 2)        # [N, Ho, Wo, C, KH*KW]
    return patches.reshape(n * ho * wo, c * kernel * kernel), ho, wo


def _pick_tiles(m, kdim, cout):
    # Lane-dense Cout tile; gn==1 for every pix2pix layer (Cout <= 512).
    tn = min(512, _round_up(cout, 128))
    cp = _round_up(cout, tn)
    tk = min(512, _round_up(kdim, 128))
    kp = _round_up(kdim, tk)
    # Ensure >= 2 M blocks whenever possible so both v7x TensorCores get work.
    if m >= 16:
        tm = min(512, _round_up((m + 1) // 2, 8))
    else:
        tm = _round_up(max(m, 1), 8)
    mp = _round_up(m, tm)
    return tm, tk, tn, mp, kp, cp


def downsample_conv(x, weight, bias, gamma, beta, *, kernel=4, stride=2,
                    padding=1, activation=True, batchnorm=True, eps=1e-5,
                    out_layout="NCHW"):
    """Forward pass of DownSampleConv. x: [N, Cin, H, W] (NCHW), f32 output."""
    n, cin, h, w = x.shape
    cout = weight.shape[0]

    # im2col in bf16 (halves patch HBM traffic, feeds the MXU its native dtype).
    patches, ho, wo = _im2col(x.astype(jnp.bfloat16), kernel, stride, padding)
    m, kdim = patches.shape
    w2d = weight.reshape(cout, -1).T.astype(jnp.bfloat16)     # [K, Cout]

    tm, tk, tn, mp, kp, cp = _pick_tiles(m, kdim, cout)
    gm, gn, gk = mp // tm, cp // tn, kp // tk

    p_pad = jnp.pad(patches, ((0, mp - m), (0, kp - kdim)))
    w_pad = jnp.pad(w2d, ((0, kp - kdim), (0, cp - cout)))

    # Safe on every generation (v5e/v6e 128 MiB physical, v7x 64 MiB); tiles
    # above use < ~5 MiB double-buffered.
    vmem_cap = 32 * 1024 * 1024

    if batchnorm:
        # ---- Pass 1: conv matmul + partial BN stats, bf16 intermediate ----
        y2d, psum, psq = pl.pallas_call(
            _conv_stats_kernel,
            out_shape=(jax.ShapeDtypeStruct((mp, cp), jnp.bfloat16),
                       jax.ShapeDtypeStruct((gm, 1, cp), jnp.float32),
                       jax.ShapeDtypeStruct((gm, 1, cp), jnp.float32)),
            grid=(gm, gn, gk),
            in_specs=[
                pl.BlockSpec((tm, tk), lambda i, j, k: (i, k)),
                pl.BlockSpec((tk, tn), lambda i, j, k: (k, j)),
            ],
            out_specs=(
                pl.BlockSpec((tm, tn), lambda i, j, k: (i, j)),
                pl.BlockSpec((1, 1, tn), lambda i, j, k: (i, 0, j)),
                pl.BlockSpec((1, 1, tn), lambda i, j, k: (i, 0, j)),
            ),
            scratch_shapes=[pltpu.VMEM((tm, tn), jnp.float32)],
            compiler_params=pltpu.CompilerParams(
                dimension_semantics=("parallel", "parallel", "arbitrary"),
                vmem_limit_bytes=vmem_cap),
        )(p_pad, w_pad)

        # ---- Tiny per-channel reduction -> fused scale/shift ----
        csum = jnp.sum(psum[:, 0, :], axis=0)           # [cp]
        csq = jnp.sum(psq[:, 0, :], axis=0)             # [cp]
        mean = csum / m                                 # biased stats over M
        var = jnp.maximum(csq / m - mean * mean, 0.0)
        gamma_p = jnp.pad(gamma.astype(jnp.float32), (0, cp - cout))
        beta_p = jnp.pad(beta.astype(jnp.float32), (0, cp - cout))
        scale = gamma_p * jax.lax.rsqrt(var + eps)
        # Conv bias skipped: under BN it is cancelled by the mean subtraction.
        shift = beta_p - mean * scale
        scale2d = scale.reshape(1, cp)
        shift2d = shift.reshape(1, cp)

        # ---- Pass 2: normalize + LeakyReLU ----
        out2d = pl.pallas_call(
            functools.partial(_scale_act_kernel, negative_slope=0.2,
                              apply_act=activation),
            out_shape=jax.ShapeDtypeStruct((mp, cp), jnp.float32),
            grid=(gm, gn),
            in_specs=[
                pl.BlockSpec((tm, tn), lambda i, j: (i, j)),
                pl.BlockSpec((1, tn), lambda i, j: (0, j)),
                pl.BlockSpec((1, tn), lambda i, j: (0, j)),
            ],
            out_specs=pl.BlockSpec((tm, tn), lambda i, j: (i, j)),
            compiler_params=pltpu.CompilerParams(
                dimension_semantics=("parallel", "parallel"),
                vmem_limit_bytes=vmem_cap),
        )(y2d, scale2d, shift2d)
    else:
        # ---- batchnorm=False: single fused pass (conv + bias + LeakyReLU) ----
        bias2d = jnp.pad(bias.astype(jnp.float32),
                         (0, cp - cout)).reshape(1, cp)
        out2d = pl.pallas_call(
            functools.partial(_conv_bias_act_kernel, negative_slope=0.2,
                              apply_act=activation),
            out_shape=jax.ShapeDtypeStruct((mp, cp), jnp.float32),
            grid=(gm, gn, gk),
            in_specs=[
                pl.BlockSpec((tm, tk), lambda i, j, k: (i, k)),
                pl.BlockSpec((tk, tn), lambda i, j, k: (k, j)),
                pl.BlockSpec((1, tn), lambda i, j, k: (0, j)),
            ],
            out_specs=pl.BlockSpec((tm, tn), lambda i, j, k: (i, j)),
            scratch_shapes=[pltpu.VMEM((tm, tn), jnp.float32)],
            compiler_params=pltpu.CompilerParams(
                dimension_semantics=("parallel", "parallel", "arbitrary"),
                vmem_limit_bytes=vmem_cap),
        )(p_pad, w_pad, bias2d)

    # Strip padding, [M, Cout] -> NHWC (and optionally NCHW at the boundary).
    out_nhwc = out2d[:m, :cout].reshape(n, ho, wo, cout)
    if out_layout == "NHWC":
        return out_nhwc
    return out_nhwc.transpose(0, 3, 1, 2)


# ----------------------------------------------------------------------------
# Plain-JAX reference (mirrors the PyTorch forward; conv operands rounded to
# bf16 to match the MXU input precision, f32 accumulation, and — when
# requested — the bf16 pass-1/pass-2 intermediate, so tolerances stay tight).
# ----------------------------------------------------------------------------
def _reference(x, weight, bias, gamma, beta, *, stride=2, padding=1,
               activation=True, batchnorm=True, eps=1e-5,
               intermediate_dtype=jnp.float32):
    xq = x.astype(jnp.bfloat16).astype(jnp.float32)
    wq = weight.astype(jnp.bfloat16).astype(jnp.float32)
    y = jax.lax.conv_general_dilated(
        xq, wq, window_strides=(stride, stride),
        padding=[(padding, padding), (padding, padding)],
        dimension_numbers=("NCHW", "OIHW", "NCHW"))
    if batchnorm:
        # Bias cancels exactly under BN mean subtraction. Stats in f32 from
        # the un-quantized conv output (as in the kernel); the normalized
        # value uses the (possibly bf16) intermediate, matching the kernel.
        mean = jnp.mean(y, axis=(0, 2, 3), keepdims=True)
        var = jnp.maximum(
            jnp.mean(y * y, axis=(0, 2, 3), keepdims=True) - mean * mean, 0.0)
        yq = y.astype(intermediate_dtype).astype(jnp.float32)
        y = (yq - mean) * jax.lax.rsqrt(var + eps)
        y = y * gamma.reshape(1, -1, 1, 1) + beta.reshape(1, -1, 1, 1)
    else:
        y = y + bias.reshape(1, -1, 1, 1)
    if activation:
        y = jnp.where(y > 0, y, 0.2 * y)
    return y


if __name__ == "__main__":
    # Small shapes consistent with the module: N=2, Cin=4, H=W=16, Cout=8.
    N, CIN, COUT, H, W = 2, 4, 8, 16, 16
    KH = 4

    key = jax.random.PRNGKey(0)
    kx, kw_, kb = jax.random.split(key, 3)

    x = jax.random.normal(kx, (N, CIN, H, W), dtype=jnp.float32)

    # Deterministic parameter init (shapes per nn.Conv2d / nn.BatchNorm2d).
    fan_in = CIN * KH * KH
    bound = 1.0 / (fan_in ** 0.5)
    weight = jax.random.uniform(kw_, (COUT, CIN, KH, KH), jnp.float32,
                                minval=-bound, maxval=bound)
    bias = jax.random.uniform(kb, (COUT,), jnp.float32,
                              minval=-bound, maxval=bound)
    gamma = jnp.ones((COUT,), jnp.float32)   # BatchNorm2d default init
    beta = jnp.zeros((COUT,), jnp.float32)

    # ---- Conv -> BatchNorm -> LeakyReLU (two-pass path) ----
    out = downsample_conv(x, weight, bias, gamma, beta,
                          activation=True, batchnorm=True)
    out = jax.block_until_ready(out)
    ref = _reference(x, weight, bias, gamma, beta,
                     activation=True, batchnorm=True,
                     intermediate_dtype=jnp.bfloat16)
    assert out.shape == (N, COUT, H // 2, W // 2), out.shape
    assert jnp.allclose(out, ref, atol=2e-3, rtol=2e-3), (
        float(jnp.max(jnp.abs(out - ref))))

    # ---- Conv -> LeakyReLU (first pix2pix block, fully fused single pass) ----
    out_nb = downsample_conv(x, weight, bias, gamma, beta,
                             activation=True, batchnorm=False)
    out_nb = jax.block_until_ready(out_nb)
    ref_nb = _reference(x, weight, bias, gamma, beta,
                        activation=True, batchnorm=False,
                        intermediate_dtype=jnp.float32)
    assert out_nb.shape == (N, COUT, H // 2, W // 2), out_nb.shape
    assert jnp.allclose(out_nb, ref_nb, atol=2e-3, rtol=2e-3), (
        float(jnp.max(jnp.abs(out_nb - ref_nb))))

    print("KERNEL_OK")
</pallas_src>

<mosaic_0001>
module attributes {stable_mosaic.version = 11 : i64} {
  func.func @_conv_stats_kernel(%arg0: i32, %arg1: i32, %arg2: i32, %arg3: memref<64x128xbf16, #tpu.memory_space<vmem>>, %arg4: memref<128x128xbf16, #tpu.memory_space<vmem>>, %arg5: memref<64x128xbf16, #tpu.memory_space<vmem>>, %arg6: memref<1x1x128xf32, #tpu.memory_space<vmem>>, %arg7: memref<1x1x128xf32, #tpu.memory_space<vmem>>, %arg8: memref<64x128xf32, #tpu.memory_space<vmem>>) attributes {dimension_semantics = [#tpu.dimension_semantics<parallel>, #tpu.dimension_semantics<parallel>, #tpu.dimension_semantics<arbitrary>], iteration_bounds = array<i64: 2, 1, 1>, scalar_prefetch = 0 : i64, scratch_operands = 1 : i64, tpu.core_type = #tpu.core_type<tc>, window_params = [{transform_indices = @transform_0, window_bounds = array<i64: 64, 128>}, {transform_indices = @transform_1, window_bounds = array<i64: 128, 128>}, {transform_indices = @transform_2, window_bounds = array<i64: 64, 128>}, {transform_indices = @transform_3, window_bounds = array<i64: 1, 1, 128>}, {transform_indices = @transform_4, window_bounds = array<i64: 1, 1, 128>}]} {
    %c0_i32 = arith.constant 0 : i32
    %0 = arith.cmpi eq, %arg2, %c0_i32 : i32
    %1 = arith.extui %0 : i1 to i32
    %c0_i32_0 = arith.constant 0 : i32
    %2 = arith.cmpi ne, %1, %c0_i32_0 : i32
    scf.if %2 {
      %cst_10 = arith.constant 0.000000e+00 : f32
      %12 = vector.broadcast %cst_10 : f32 to vector<64x128xf32>
      %c0_11 = arith.constant 0 : index
      %c0_12 = arith.constant 0 : index
      %13 = vector.load %arg8[%c0_11, %c0_12] : memref<64x128xf32, #tpu.memory_space<vmem>>, vector<64x128xf32>
      tpu.vector_store %arg8[%c0_11, %c0_12], %12 {strides = array<i32>} : memref<64x128xf32, #tpu.memory_space<vmem>>, vector<64x128xf32>,
    } else {
    }
    %c0 = arith.constant 0 : index
    %c0_1 = arith.constant 0 : index
    %3 = vector.load %arg8[%c0, %c0_1] : memref<64x128xf32, #tpu.memory_space<vmem>>, vector<64x128xf32>
    %c0_2 = arith.constant 0 : index
    %c0_3 = arith.constant 0 : index
    %4 = vector.load %arg3[%c0_2, %c0_3] : memref<64x128xbf16, #tpu.memory_space<vmem>>, vector<64x128xbf16>
    %c0_4 = arith.constant 0 : index
    %c0_5 = arith.constant 0 : index
    %5 = vector.load %arg4[%c0_4, %c0_5] : memref<128x128xbf16, #tpu.memory_space<vmem>>, vector<128x128xbf16>
    %cst = arith.constant dense<0.000000e+00> : vector<64x128xf32>
    %6 = tpu.matmul %4, %5, %cst {dimension_numbers = #tpu.dot_dimension_numbers<[1], [0], [0], [1], [0, 0, 1, 1], [], []>} : vector<64x128xbf16>, vector<128x128xbf16>, vector<64x128xf32> -> vector<64x128xf32>
    %7 = arith.addf %3, %6 : vector<64x128xf32>
    %c0_6 = arith.constant 0 : index
    %c0_7 = arith.constant 0 : index
    %8 = vector.load %arg8[%c0_6, %c0_7] : memref<64x128xf32, #tpu.memory_space<vmem>>, vector<64x128xf32>
    tpu.vector_store %arg8[%c0_6, %c0_7], %7 {strides = array<i32>} : memref<64x128xf32, #tpu.memory_space<vmem>>, vector<64x128xf32>,
    %c0_i32_8 = arith.constant 0 : i32
    %9 = arith.cmpi eq, %arg2, %c0_i32_8 : i32
    %10 = arith.extui %9 : i1 to i32
    %c0_i32_9 = arith.constant 0 : i32
    %11 = arith.cmpi ne, %10, %c0_i32_9 : i32
    scf.if %11 {
      %c0_10 = arith.constant 0 : index
      %c0_11 = arith.constant 0 : index
      %12 = vector.load %arg8[%c0_10, %c0_11] : memref<64x128xf32, #tpu.memory_space<vmem>>, vector<64x128xf32>
      %13 = arith.truncf %12 : vector<64x128xf32> to vector<64x128xbf16>
      %c0_12 = arith.constant 0 : index
      %c0_13 = arith.constant 0 : index
      %14 = vector.load %arg5[%c0_12, %c0_13] : memref<64x128xbf16, #tpu.memory_space<vmem>>, vector<64x128xbf16>
      tpu.vector_store %arg5[%c0_12, %c0_13], %13 {strides = array<i32>} : memref<64x128xbf16, #tpu.memory_space<vmem>>, vector<64x128xbf16>,
      %cst_14 = arith.constant dense<0.000000e+00> : vector<128xf32>
      %15 = vector.multi_reduction <add>, %12, %cst_14 [0] : vector<64x128xf32> to vector<128xf32>
      %16 = vector.shape_cast %15 : vector<128xf32> to vector<1x128xf32>
      %17 = vector.shape_cast %16 : vector<1x128xf32> to vector<1x1x128xf32>
      %c0_15 = arith.constant 0 : index
      %c0_16 = arith.constant 0 : index
      %c0_17 = arith.constant 0 : index
      %18 = vector.load %arg6[%c0_15, %c0_16, %c0_17] : memref<1x1x128xf32, #tpu.memory_space<vmem>>, vector<1x1x128xf32>
      tpu.vector_store %arg6[%c0_15, %c0_16, %c0_17], %17 {strides = array<i32>} : memref<1x1x128xf32, #tpu.memory_space<vmem>>, vector<1x1x128xf32>,
      %19 = arith.mulf %12, %12 : vector<64x128xf32>
      %cst_18 = arith.constant dense<0.000000e+00> : vector<128xf32>
      %20 = vector.multi_reduction <add>, %19, %cst_18 [0] : vector<64x128xf32> to vector<128xf32>
      %21 = vector.shape_cast %20 : vector<128xf32> to vector<1x128xf32>
      %22 = vector.shape_cast %21 : vector<1x128xf32> to vector<1x1x128xf32>
      %c0_19 = arith.constant 0 : index
      %c0_20 = arith.constant 0 : index
      %c0_21 = arith.constant 0 : index
      %23 = vector.load %arg7[%c0_19, %c0_20, %c0_21] : memref<1x1x128xf32, #tpu.memory_space<vmem>>, vector<1x1x128xf32>
      tpu.vector_store %arg7[%c0_19, %c0_20, %c0_21], %22 {strides = array<i32>} : memref<1x1x128xf32, #tpu.memory_space<vmem>>, vector<1x1x128xf32>,
    } else {
    }
    return
  }
  func.func @transform_0(%arg0: i32, %arg1: i32, %arg2: i32) -> (i32, i32) {
    %c0_i32 = arith.constant 0 : i32
    return %arg0, %arg2 : i32, i32
  }
  func.func @transform_1(%arg0: i32, %arg1: i32, %arg2: i32) -> (i32, i32) {
    %c0_i32 = arith.constant 0 : i32
    return %arg2, %arg1 : i32, i32
  }
  func.func @transform_2(%arg0: i32, %arg1: i32, %arg2: i32) -> (i32, i32) {
    %c0_i32 = arith.constant 0 : i32
    return %arg0, %arg1 : i32, i32
  }
  func.func @transform_3(%arg0: i32, %arg1: i32, %arg2: i32) -> (i32, i32, i32) {
    %c0_i32 = arith.constant 0 : i32
    %c0_i32_0 = arith.constant 0 : i32
    return %arg0, %c0_i32, %arg1 : i32, i32, i32
  }
  func.func @transform_4(%arg0: i32, %arg1: i32, %arg2: i32) -> (i32, i32, i32) {
    %c0_i32 = arith.constant 0 : i32
    %c0_i32_0 = arith.constant 0 : i32
    return %arg0, %c0_i32, %arg1 : i32, i32, i32
  }
}

</mosaic_0001>

<llo_original>
// kernel: tpu_custom_call.1
$region0: #{tpu_custom_call.1}
  #allocation0 [shape = 'u32[]', space=smem, size = 0x4, offset = 0x4, fixed_abs, tag = 'smem constant byte address 0x4 - core index']
  #allocation1 [shape = 'u32[144,128]{1,0:T(1,128)}', space=vmem, size = 0x12000, scoped, tag = 'internal scratch']
  #allocation2 [shape = 'f32[64,128]{1,0:T(8,128)}', space=vmem, size = 0x8000, scoped, tag = 'scratch operand']
  %s0 = inlined_call_operand.hbm [shape: bf16[128,128], index: 0, kind: input, shape index: {}]
  %s1 = inlined_call_operand.hbm [shape: bf16[128,128], index: 1, kind: input, shape index: {}]
  %s2 = inlined_call_operand.hbm [shape: bf16[128,128], index: 2, kind: output, shape index: {0}]
  %s3 = inlined_call_operand.hbm [shape: f32[2,1,128], index: 3, kind: output, shape index: {1}]
  %s4 = inlined_call_operand.hbm [shape: f32[2,1,128], index: 4, kind: output, shape index: {2}]
  %5 = xla_tuple %s2, %s3, %s4
  %s6 = sld [smem:[#allocation0]]
  $region73: #{tpu_custom_call.1} parent=0
    _
  %s8 = ssub.s32 1, %s6
  %s9 = scalar_select 0, %s8, %s6
  $region1: #{tpu_custom_call.1} parent=0
    #allocation3 [shape = 'u8[32768]{0}', space=vmem, size = 0x8000, scoped, tag = 'input window, operand 0']
    #allocation4 [shape = 's32[2]{0}', space=sflag, size = 0x8, scoped, tag = 'scoped memory for tpu_custom_call.1']
    #allocation5 [shape = 's32[2]{0}', space=sflag, size = 0x8, scoped, tag = 'scoped memory for tpu_custom_call.1']
    #allocation6 [shape = 'u8[32768]{0}', space=vmem, size = 0x8000, scoped, tag = 'input window, operand 1, single buffered']
    #allocation7 [shape = 's32[1]{0}', space=sflag, size = 0x4, scoped, tag = 'scoped memory for tpu_custom_call.1']
    #allocation8 [shape = 'u8[32768]{0}', space=vmem, size = 0x8000, scoped, tag = 'output window, operand 0']
    #allocation9 [shape = 'u8[1024]{0}', space=vmem, size = 0x400, scoped, tag = 'output window, operand 1']
    #allocation10 [shape = 's32[2]{0}', space=sflag, size = 0x8, scoped, tag = 'scoped memory for tpu_custom_call.1']
    #allocation11 [shape = 'u8[1024]{0}', space=vmem, size = 0x400, scoped, tag = 'output window, operand 2']
    %10 = vsyncpa [#allocation4], 0
    %s11 = scalar_lea.sflag [#allocation4], 1
    %12 = vsyncpa %s11, 0
    %13 = vsyncpa [#allocation7], 0
    %14 = vsyncpa [#allocation5], 0
    %s15 = scalar_lea.sflag [#allocation5], 1
    %16 = vsyncpa %s15, 0
    %17 = vsyncpa [#allocation10], 0
    %s18 = scalar_lea.sflag [#allocation10], 1
    %19 = vsyncpa %s18, 0
    loop: start=0, step=1, limit=4
    $region2: #{tpu_custom_call.1} parent=1 // loop_pre_header
      _
    $region3: #{tpu_custom_call.1} parent=1 // loop_header
      %s21 = sphi 0, %s25
      %p22 = scmp.ge.s32.totalorder %s21, 4
      %s28 = sphi 0, %s47
      %s29 = sphi 0, %s43
      %s30 = sphi 0, %s39
      %s31 = sphi 0, %s28
      %s32 = sphi 0, %s29
      %s33 = sphi 0, %s30
      %s34 = sphi 0, %s31
      %s35 = sphi 0, %s32
      %s36 = sphi 0, %s33
      %s52 = sphi 0, %s54
      %s55 = sphi 0, %s52
      %s56 = sphi 0, %s55
      %s72 = sphi 0, %s56
      %s80 = sphi 0, %s82
      %s83 = sphi 0, %s80
      %s84 = sphi 0, %s83
      %s100 = sphi 0, %s84
      %s108 = sphi 0, %s110
      %s111 = sphi 0, %s108
      %s112 = sphi 0, %s111
      %s128 = sphi 0, %s112
      %s136 = sphi 0, %s138
      %s139 = sphi 0, %s136
      %s140 = sphi 0, %s139
      %s156 = sphi 0, %s140
      %s164 = sphi 0, %s166
      %s167 = sphi 0, %s164
      %s168 = sphi 0, %s167
      %s184 = sphi 0, %s168
    $region4: #{tpu_custom_call.1} parent=1 // loop_header_branch
      %24 = sbr.rel (%p22) target = $region8
    $region5: #{tpu_custom_call.1} parent=1 // loop_body
      %s26 = ssub.s32 %s21, 1
      %s27 = ssub.s32 %s21, 2
      %s37 = sadd.s32 1, %s30
      %p38 = scmp.ge.s32.totalorder %s37, 1
      %s39 = scalar_select %p38, 0, %s37
      %s40 = sadd.s32 1, %s29
      %s41 = scalar_select %p38, %s40, %s29
      %p42 = scmp.ge.s32.totalorder %s41, 1
      %s43 = scalar_select %p42, 0, %s41
      %s44 = sadd.s32 1, %s28
      %s45 = scalar_select %p42, %s44, %s28
      %p46 = scmp.ge.s32.totalorder %s45, 2
      %s47 = scalar_select %p46, 0, %s45
      %s48 = ssub.s32 %s28, %s47
      %s49 = ssub.s32 %s30, %s39
      %s50 = sor.u32 %s48, %s49
      %p51 = scmp.eq.s32.totalorder %s50, 0
      %s53 = sadd.s32 %s52, 1
      %s54 = scalar_select %p51, %s52, %s53
      %p57 = pneg %p51
      %p58 = scmp.eq.s32.totalorder %s21, 1
      %p59 = por %p57, %p58
      %p60 = scmp.ne.s32.totalorder %s52, %s55
      %p61 = scmp.eq.s32.totalorder %s21, 0
      %p62 = por %p60, %p61
      %p63 = scmp.ne.s32.totalorder %s52, %s55
      %p64 = scmp.eq.s32.totalorder %s26, 1
      %p65 = por %p63, %p64
      %p66 = scmp.ne.s32.totalorder %s55, %s56
      %p67 = scmp.eq.s32.totalorder %s26, 0
      %p68 = por %p66, %p67
      %p69 = scmp.ne.s32.totalorder %s55, %s56
      %p70 = scmp.eq.s32.totalorder %s27, 1
      %p71 = por %p69, %p70
      %p73 = scmp.ne.s32.totalorder %s56, %s72
      %p74 = scmp.eq.s32.totalorder %s27, 0
      %p75 = por %p73, %p74
      %s76 = ssub.s32 %s30, %s39
      %s77 = ssub.s32 %s29, %s43
      %s78 = sor.u32 %s76, %s77
      %p79 = scmp.eq.s32.totalorder %s78, 0
      %s81 = sadd.s32 %s80, 1
      %s82 = scalar_select %p79, %s80, %s81
      %p85 = pneg %p79
      %p86 = scmp.eq.s32.totalorder %s21, 1
      %p87 = por %p85, %p86
      %p88 = scmp.ne.s32.totalorder %s80, %s83
      %p89 = scmp.eq.s32.totalorder %s21, 0
      %p90 = por %p88, %p89
      %p91 = scmp.ne.s32.totalorder %s80, %s83
      %p92 = scmp.eq.s32.totalorder %s26, 1
      %p93 = por %p91, %p92
      %p94 = scmp.ne.s32.totalorder %s83, %s84
      %p95 = scmp.eq.s32.totalorder %s26, 0
      %p96 = por %p94, %p95
      %p97 = scmp.ne.s32.totalorder %s83, %s84
      %p98 = scmp.eq.s32.totalorder %s27, 1
      %p99 = por %p97, %p98
      %p101 = scmp.ne.s32.totalorder %s84, %s100
      %p102 = scmp.eq.s32.totalorder %s27, 0
      %p103 = por %p101, %p102
      %s104 = ssub.s32 %s28, %s47
      %s105 = ssub.s32 %s29, %s43
      %s106 = sor.u32 %s104, %s105
      %p107 = scmp.eq.s32.totalorder %s106, 0
      %s109 = sadd.s32 %s108, 1
      %s110 = scalar_select %p107, %s108, %s109
      %p113 = pneg %p107
      %p114 = scmp.eq.s32.totalorder %s21, 1
      %p115 = por %p113, %p114
      %p116 = scmp.ne.s32.totalorder %s108, %s111
      %p117 = scmp.eq.s32.totalorder %s21, 0
      %p118 = por %p116, %p117
      %p119 = scmp.ne.s32.totalorder %s108, %s111
      %p120 = scmp.eq.s32.totalorder %s26, 1
      %p121 = por %p119, %p120
      %p122 = scmp.ne.s32.totalorder %s111, %s112
      %p123 = scmp.eq.s32.totalorder %s26, 0
      %p124 = por %p122, %p123
      %p125 = scmp.ne.s32.totalorder %s111, %s112
      %p126 = scmp.eq.s32.totalorder %s27, 1
      %p127 = por %p125, %p126
      %p129 = scmp.ne.s32.totalorder %s112, %s128
      %p130 = scmp.eq.s32.totalorder %s27, 0
      %p131 = por %p129, %p130
      %s132 = ssub.s32 %s28, %s47
      %s133 = ssub.s32 %s29, %s43
      %s134 = sor.u32 %s132, %s133
      %p135 = scmp.eq.s32.totalorder %s134, 0
      %s137 = sadd.s32 %s136, 1
      %s138 = scalar_select %p135, %s136, %s137
      %p141 = pneg %p135
      %p142 = scmp.eq.s32.totalorder %s21, 1
      %p143 = por %p141, %p142
      %p144 = scmp.ne.s32.totalorder %s136, %s139
      %p145 = scmp.eq.s32.totalorder %s21, 0
      %p146 = por %p144, %p145
      %p147 = scmp.ne.s32.totalorder %s136, %s139
      %p148 = scmp.eq.s32.totalorder %s26, 1
      %p149 = por %p147, %p148
      %p150 = scmp.ne.s32.totalorder %s139, %s140
      %p151 = scmp.eq.s32.totalorder %s26, 0
      %p152 = por %p150, %p151
      %p153 = scmp.ne.s32.totalorder %s139, %s140
      %p154 = scmp.eq.s32.totalorder %s27, 1
      %p155 = por %p153, %p154
      %p157 = scmp.ne.s32.totalorder %s140, %s156
      %p158 = scmp.eq.s32.totalorder %s27, 0
      %p159 = por %p157, %p158
      %s160 = ssub.s32 %s28, %s47
      %s161 = ssub.s32 %s29, %s43
      %s162 = sor.u32 %s160, %s161
      %p163 = scmp.eq.s32.totalorder %s162, 0
      %s165 = sadd.s32 %s164, 1
      %s166 = scalar_select %p163, %s164, %s165
      %p169 = pneg %p163
      %p170 = scmp.eq.s32.totalorder %s21, 1
      %p171 = por %p169, %p170
      %p172 = scmp.ne.s32.totalorder %s164, %s167
      %p173 = scmp.eq.s32.totalorder %s21, 0
      %p174 = por %p172, %p173
      %p175 = scmp.ne.s32.totalorder %s164, %s167
      %p176 = scmp.eq.s32.totalorder %s26, 1
      %p177 = por %p175, %p176
      %p178 = scmp.ne.s32.totalorder %s167, %s168
      %p179 = scmp.eq.s32.totalorder %s26, 0
      %p180 = por %p178, %p179
      %p181 = scmp.ne.s32.totalorder %s167, %s168
      %p182 = scmp.eq.s32.totalorder %s27, 1
      %p183 = por %p181, %p182
      %p185 = scmp.ne.s32.totalorder %s168, %s184
      %p186 = scmp.eq.s32.totalorder %s27, 0
      %p187 = por %p185, %p186
      %p188 = scmp.le.s32.totalorder 1, %s21
      %p189 = scmp.lt.s32.totalorder %s21, 3
      %p190 = pnand %p188, %p189
      %p191 = pneg %p190
      // Predicated region
      $region9: #{tpu_custom_call.1} parent=5 // pred_check
        _
      $region10: #{tpu_custom_call.1} parent=5 // pred_check_branch
        %193 = sbr.rel (%p190) target = $region12
      $region11: #{tpu_custom_call.1} parent=5 // pred_region
        %s194 = ssub.s32 %s21, 1
        // Predicated region
        $region13: #{tpu_custom_call.1} parent=11 // pred_check
          %p195 = pneg %p96
        $region14: #{tpu_custom_call.1} parent=11 // pred_check_branch
          %197 = sbr.rel (%p195) target = $region16
        $region15: #{tpu_custom_call.1} parent=11 // pred_region
          %s198 = smul.u32 16, %s33
          %s200 = ssub.s32 1024, 1024
          %201 = vsyncadd [#allocation7], %s200
          %s202 = sadd.s32 %s32, %s198
          %s203 = smul.addr %s202, 64
          %s204 = scalar_lea.hbm %s1, %s203
          %s205 = sshll.u32 [#allocation6], 4
          %s206 = int_to_ptr.vmem [resolvable:$true] %s205
          %211 = dma.hbm_to_vmem [thread:$0]  %s204, 1024, %s206, [#allocation7], 64, 64, 4
        $region16: #{tpu_custom_call.1} parent=11 // pred_fallthru
          _
      $region12: #{tpu_custom_call.1} parent=5 // pred_fallthru
        _
      %p212 = scmp.lt.s32.totalorder %s21, 2
      // Predicated region
      $region17: #{tpu_custom_call.1} parent=5 // pred_check
        %p213 = pneg %p212
      $region18: #{tpu_custom_call.1} parent=5 // pred_check_branch
        %215 = sbr.rel (%p213) target = $region20
      $region19: #{tpu_custom_call.1} parent=5 // pred_region
        // Predicated region
        $region21: #{tpu_custom_call.1} parent=19 // pred_check
          %p216 = pneg %p62
        $region22: #{tpu_custom_call.1} parent=19 // pred_check_branch
          %218 = sbr.rel (%p216) target = $region24
        $region23: #{tpu_custom_call.1} parent=19 // pred_region
          %s219 = sand.u32 %s52, 1
          %s220 = scalar_lea.sflag [#allocation4], %s219
          %s221 = sand.u32 %s52, 1
          %s222 = smul.addr %s221, 32
          %s223 = scalar_lea.vmem [#allocation3], %s222
          %s224 = smul.u32 8, %s28
          %s226 = ssub.s32 512, 512
          %227 = vsyncadd %s220, %s226
          %s228 = sadd.s32 %s30, %s224
          %s229 = smul.addr %s228, 64
          %s230 = scalar_lea.hbm %s0, %s229
          %s231 = sshll.u32 %s223, 4
          %s232 = int_to_ptr.vmem [resolvable:$true] %s231
          %237 = dma.hbm_to_vmem [thread:$0]  %s230, 512, %s232, %s220, 64, 64, 4
        $region24: #{tpu_custom_call.1} parent=19 // pred_fallthru
          _
      $region20: #{tpu_custom_call.1} parent=5 // pred_fallthru
        _
      %p238 = scmp.le.s32.totalorder 1, %s21
      %p239 = scmp.lt.s32.totalorder %s21, 3
      %p240 = pnand %p238, %p239
      %p241 = pneg %p240
      // Predicated region
      $region25: #{tpu_custom_call.1} parent=5 // pred_check
        _
      $region26: #{tpu_custom_call.1} parent=5 // pred_check_branch
        %243 = sbr.rel (%p240) target = $region28
      $region27: #{tpu_custom_call.1} parent=5 // pred_region
        %s244 = ssub.s32 %s21, 1
        %s245 = sand.u32 %s55, 1
        %s246 = scalar_lea.sflag [#allocation4], %s245
        %s247 = sand.u32 %s55, 1
        %s248 = smul.addr %s247, 32
        %s249 = scalar_lea.vmem [#allocation3], %s248
        // Predicated region
        $region29: #{tpu_custom_call.1} parent=27 // pred_check
          %p250 = pneg %p68
        $region30: #{tpu_custom_call.1} parent=27 // pred_check_branch
          %252 = sbr.rel (%p250) target = $region32
        $region31: #{tpu_custom_call.1} parent=27 // pred_region
          %253 = dma.done %s246, 512
        $region32: #{tpu_custom_call.1} parent=27 // pred_fallthru
          _
        // Predicated region
        $region33: #{tpu_custom_call.1} parent=27 // pred_check
          %p254 = pneg %p96
        $region34: #{tpu_custom_call.1} parent=27 // pred_check_branch
          %256 = sbr.rel (%p254) target = $region36
        $region35: #{tpu_custom_call.1} parent=27 // pred_region
          %257 = dma.done [#allocation7], 1024
        $region36: #{tpu_custom_call.1} parent=27 // pred_fallthru
          _
        %s258 = sand.u32 %s55, 1
        %s259 = scalar_lea.sflag [#allocation4], %s258
        %s260 = sand.u32 %s55, 1
        %s261 = smul.addr %s260, 32
        %s262 = scalar_lea.vmem [#allocation3], %s261
        %p263 = pneg %p68
        %p264 = pneg %p65
        %p265 = pneg %p96
        %p266 = pneg %p93
        %p267 = pneg %p124
        %p268 = pneg %p121
        %s269 = sand.u32 %s111, 1
        %s270 = scalar_lea.sflag [#allocation5], %s269
        %s271 = sand.u32 %s111, 1
        %s272 = smul.addr %s271, 32
        %s273 = scalar_lea.vmem [#allocation8], %s272
        %p274 = pneg %p152
        %p275 = pneg %p149
        %s276 = sand.u32 %s26, 1
        %s277 = scalar_lea.sflag [#allocation10], %s276
        %s278 = sand.u32 %s139, 1
        %s279 = scalar_lea.vmem [#allocation9], %s278
        %p280 = pneg %p180
        %p281 = pneg %p177
        %s282 = sand.u32 %s26, 1
        %s283 = scalar_lea.sflag [#allocation10], %s282
        %s284 = sand.u32 %s167, 1
        %s285 = scalar_lea.vmem [#allocation11], %s284
        %s286 = smul.u32 8, %s31
        %s287 = smul.u32 16, %s33
        %s288 = smul.u32 8, %s31
        %p290 = scmp.eq.s32.totalorder %s33, 0
        // Predicated region
        $region37: #{tpu_custom_call.1} parent=27 // pred_check
          %p291 = pneg %p290
        $region38: #{tpu_custom_call.1} parent=27 // pred_check_branch
          %293 = sbr.rel (%p291) target = $region40
        $region39: #{tpu_custom_call.1} parent=27 // pred_region
          %294 = vst [vmem:[#allocation2] sm:$0xff] 0.0
          %295 = vst [vmem:[#allocation2 + $0x8] sm:$0xff] 0.0
          %296 = vst [vmem:[#allocation2 + $0x10] sm:$0xff] 0.0
          %297 = vst [vmem:[#allocation2 + $0x18] sm:$0xff] 0.0
          %298 = vst [vmem:[#allocation2 + $0x20] sm:$0xff] 0.0
          %299 = vst [vmem:[#allocation2 + $0x28] sm:$0xff] 0.0
          %300 = vst [vmem:[#allocation2 + $0x30] sm:$0xff] 0.0
          %301 = vst [vmem:[#allocation2 + $0x38] sm:$0xff] 0.0
        $region40: #{tpu_custom_call.1} parent=27 // pred_fallthru
          _
        %v302 = vld [vmem:[#allocation2] sm:$0xff]
        %v303 = vld [vmem:[#allocation2 + $0x8] sm:$0xff]
        %v304 = vld [vmem:[#allocation2 + $0x10] sm:$0xff]
        %v305 = vld [vmem:[#allocation2 + $0x18] sm:$0xff]
        %v306 = vld [vmem:[#allocation2 + $0x20] sm:$0xff]
        %v307 = vld [vmem:[#allocation2 + $0x28] sm:$0xff]
        %v308 = vld [vmem:[#allocation2 + $0x30] sm:$0xff]
        %v309 = vld [vmem:[#allocation2 + $0x38] sm:$0xff]
        %v310 = vld [vmem:[%s249] sm:$0xf]
        %v311 = vld [vmem:[%s249 + $0x4] sm:$0xf]
        %v312 = vld [vmem:[%s249 + $0x8] sm:$0xf]
        %v313 = vld [vmem:[%s249 + $0xc] sm:$0xf]
        %v314 = vld [vmem:[%s249 + $0x10] sm:$0xf]
        %v315 = vld [vmem:[%s249 + $0x14] sm:$0xf]
        %v316 = vld [vmem:[%s249 + $0x18] sm:$0xf]
        %v317 = vld [vmem:[%s249 + $0x1c] sm:$0xf]
        %v318 = vld [vmem:[#allocation6] sm:$0xf]
        %v319 = vld [vmem:[#allocation6 + $0x4] sm:$0xf]
        %v320 = vld [vmem:[#allocation6 + $0x8] sm:$0xf]
        %v321 = vld [vmem:[#allocation6 + $0xc] sm:$0xf]
        %v322 = vld [vmem:[#allocation6 + $0x10] sm:$0xf]
        %v323 = vld [vmem:[#allocation6 + $0x14] sm:$0xf]
        %v324 = vld [vmem:[#allocation6 + $0x18] sm:$0xf]
        %v325 = vld [vmem:[#allocation6 + $0x1c] sm:$0xf]
        %v326 = vld [vmem:[#allocation6 + $0x20] sm:$0xf]
        %v327 = vld [vmem:[#allocation6 + $0x24] sm:$0xf]
        %v328 = vld [vmem:[#allocation6 + $0x28] sm:$0xf]
        %v329 = vld [vmem:[#allocation6 + $0x2c] sm:$0xf]
        %v330 = vld [vmem:[#allocation6 + $0x30] sm:$0xf]
        %v331 = vld [vmem:[#allocation6 + $0x34] sm:$0xf]
        %v332 = vld [vmem:[#allocation6 + $0x38] sm:$0xf]
        %v333 = vld [vmem:[#allocation6 + $0x3c] sm:$0xf]
        %v342 = vunpack.c.l.b16 %v310
        %v343 = vunpack.c.l.b16 %v311
        %v344 = vunpack.c.l.b16 %v312
        %v345 = vunpack.c.l.b16 %v313
        %v346 = vunpack.c.l.b16 %v314
        %v347 = vunpack.c.l.b16 %v315
        %v348 = vunpack.c.l.b16 %v316
        %v349 = vunpack.c.l.b16 %v317
        %v350 = vpack.c.b16 %v343, %v342
        %v351 = vpack.c.b16 %v345, %v344
        %v352 = vpack.c.b16 %v347, %v346
        %v353 = vpack.c.b16 %v349, %v348
        %v374 = vunpack.c.l.b16 %v318
        %v375 = vunpack.c.l.b16 %v319
        %v376 = vunpack.c.l.b16 %v320
        %v377 = vunpack.c.l.b16 %v321
        %v378 = vunpack.c.l.b16 %v322
        %v379 = vunpack.c.l.b16 %v323
        %v380 = vunpack.c.l.b16 %v324
        %v381 = vunpack.c.l.b16 %v325
        %v382 = vunpack.c.l.b16 %v326
        %v383 = vunpack.c.l.b16 %v327
        %v384 = vunpack.c.l.b16 %v328
        %v385 = vunpack.c.l.b16 %v329
        %v386 = vunpack.c.l.b16 %v330
        %v387 = vunpack.c.l.b16 %v331
        %v388 = vunpack.c.l.b16 %v332
        %v389 = vunpack.c.l.b16 %v333
        %v390 = vpack.c.b16 %v375, %v374
        %v391 = vpack.c.b16 %v377, %v376
        %v392 = vpack.c.b16 %v379, %v378
        %v393 = vpack.c.b16 %v381, %v380
        %v394 = vpack.c.b16 %v383, %v382
        %v395 = vpack.c.b16 %v385, %v384
        %v396 = vpack.c.b16 %v387, %v386
        %v397 = vpack.c.b16 %v389, %v388
        %406 = vmatprep.subr.bf16.mxu0 0
        %407 = vmatpush1.bf16.msra.mxu0 %v390
        %408 = vmatprep.subr.bf16.mxu0 0
        %409 = vmatpush1.bf16.msra.mxu0 %v391
        %410 = vmatprep.subr.bf16.mxu0 0
        %411 = vmatpush1.bf16.msra.mxu0 %v392
        %412 = vmatprep.subr.bf16.mxu0 0
        %413 = vmatpush1.bf16.msra.mxu0 %v393
        %414 = vmatprep.subr.bf16.mxu0 0
        %415 = vmatpush1.bf16.msra.mxu0 %v394
        %416 = vmatprep.subr.bf16.mxu0 0
        %417 = vmatpush1.bf16.msra.mxu0 %v395
        %418 = vmatprep.subr.bf16.mxu0 0
        %419 = vmatpush1.bf16.msra.mxu0 %v396
        %420 = vmatprep.subr.bf16.mxu0 0
        %421 = vmatpush1.bf16.msra.mxu0 %v397
        %422 = vmatprep.subr.bf16.mxu0 0
        %423 = vmatpush1.bf16.msra.mxu0 0
        %424 = vmatprep.subr.bf16.mxu0 0
        %425 = vmatpush1.bf16.msra.mxu0 0
        %426 = vmatprep.subr.bf16.mxu0 0
        %427 = vmatpush1.bf16.msra.mxu0 0
        %428 = vmatprep.subr.bf16.mxu0 0
        %429 = vmatpush1.bf16.msra.mxu0 0
        %430 = vmatprep.subr.bf16.mxu0 0
        %431 = vmatpush1.bf16.msra.mxu0 0
        %432 = vmatprep.subr.bf16.mxu0 0
        %433 = vmatpush1.bf16.msra.mxu0 0
        %434 = vmatprep.subr.bf16.mxu0 0
        %435 = vmatpush1.bf16.msra.mxu0 0
        %436 = vmatprep.subr.bf16.mxu0 0
        %437 = vmatpush1.bf16.msra.mxu0 0
        %438 = vmatprep.mubr.bf16.mxu0 0
        %439 = vmatmul.mubr.bf16.gmra.mrb[0].mxu0 %v350
        %v440 = vpop.f32.mrb[0].mxu0
        %v441 = vadd.f32 0.0, %v440
        %v442 = vpop.f32.mrb[0].mxu0
        %v443 = vpop.f32.mrb[0].mxu0
        %v444 = vadd.f32 0.0, %v443
        %v445 = vpop.f32.mrb[0].mxu0
        %446 = vmatprep.mubr.bf16.mxu0 0
        %447 = vmatmul.mubr.bf16.gmra.mrb[0].mxu0 %v351
        %v448 = vpop.f32.mrb[0].mxu0
        %v449 = vadd.f32 0.0, %v448
        %v450 = vpop.f32.mrb[0].mxu0
        %v451 = vpop.f32.mrb[0].mxu0
        %v452 = vadd.f32 0.0, %v451
        %v453 = vpop.f32.mrb[0].mxu0
        %454 = vmatprep.mubr.bf16.mxu0 0
        %455 = vmatmul.mubr.bf16.gmra.mrb[0].mxu0 %v352
        %v456 = vpop.f32.mrb[0].mxu0
        %v457 = vadd.f32 0.0, %v456
        %v458 = vpop.f32.mrb[0].mxu0
        %v459 = vpop.f32.mrb[0].mxu0
        %v460 = vadd.f32 0.0, %v459
        %v461 = vpop.f32.mrb[0].mxu0
        %462 = vmatprep.mubr.bf16.mxu0 0
        %463 = vmatmul.mubr.bf16.gmra.mrb[0].mxu0 %v353
        %v464 = vpop.f32.mrb[0].mxu0
        %v465 = vadd.f32 0.0, %v464
        %v466 = vpop.f32.mrb[0].mxu0
        %v467 = vpop.f32.mrb[0].mxu0
        %v468 = vadd.f32 0.0, %v467
        %v469 = vpop.f32.mrb[0].mxu0
        %470 = vdwg.mxu0
        %v471 = vadd.f32 %v302, %v441
        %v472 = vadd.f32 %v303, %v444
        %v473 = vadd.f32 %v304, %v449
        %v474 = vadd.f32 %v305, %v452
        %v475 = vadd.f32 %v306, %v457
        %v476 = vadd.f32 %v307, %v460
        %v477 = vadd.f32 %v308, %v465
        %v478 = vadd.f32 %v309, %v468
        %479 = vst [vmem:[#allocation2] sm:$0xff] %v471
        %480 = vst [vmem:[#allocation2 + $0x8] sm:$0xff] %v472
        %481 = vst [vmem:[#allocation2 + $0x10] sm:$0xff] %v473
        %482 = vst [vmem:[#allocation2 + $0x18] sm:$0xff] %v474
        %483 = vst [vmem:[#allocation2 + $0x20] sm:$0xff] %v475
        %484 = vst [vmem:[#allocation2 + $0x28] sm:$0xff] %v476
        %485 = vst [vmem:[#allocation2 + $0x30] sm:$0xff] %v477
        %486 = vst [vmem:[#allocation2 + $0x38] sm:$0xff] %v478
        // Predicated region
        $region41: #{tpu_custom_call.1} parent=27 // pred_check
          %p487 = pneg %p290
        $region42: #{tpu_custom_call.1} parent=27 // pred_check_branch
          %489 = sbr.rel (%p487) target = $region44
        $region43: #{tpu_custom_call.1} parent=27 // pred_region
          %v490 = vld [vmem:[#allocation2] sm:$0xff]
          %v491 = vld [vmem:[#allocation2 + $0x8] sm:$0xff]
          %v492 = vld [vmem:[#allocation2 + $0x10] sm:$0xff]
          %v493 = vld [vmem:[#allocation2 + $0x18] sm:$0xff]
          %v494 = vld [vmem:[#allocation2 + $0x20] sm:$0xff]
          %v495 = vld [vmem:[#allocation2 + $0x28] sm:$0xff]
          %v496 = vld [vmem:[#allocation2 + $0x30] sm:$0xff]
          %v497 = vld [vmem:[#allocation2 + $0x38] sm:$0xff]
          %v498 = vpack.c.bf16 %v491, %v490
          %v499 = vpack.c.bf16 %v493, %v492
          %v500 = vpack.c.bf16 %v495, %v494
          %v501 = vpack.c.bf16 %v497, %v496
          %v506 = vunpack.c.l.b16 %v498
          %v507 = vunpack.c.h.b16 %v498
          %v508 = vunpack.c.l.b16 %v499
          %v509 = vunpack.c.h.b16 %v499
          %v510 = vunpack.c.l.b16 %v500
          %v511 = vunpack.c.h.b16 %v500
          %v512 = vunpack.c.l.b16 %v501
          %v513 = vunpack.c.h.b16 %v501
          %v514 = vpack.c.b16 %v506, %v506
          %v515 = vpack.c.b16 %v507, %v507
          %v516 = vpack.c.b16 %v508, %v508
          %v517 = vpack.c.b16 %v509, %v509
          %v518 = vpack.c.b16 %v510, %v510
          %v519 = vpack.c.b16 %v511, %v511
          %v520 = vpack.c.b16 %v512, %v512
          %v521 = vpack.c.b16 %v513, %v513
          %530 = vst [vmem:[%s273] sm:$0xf] %v514
          %531 = vst [vmem:[%s273 + $0x4] sm:$0xf] %v515
          %532 = vst [vmem:[%s273 + $0x8] sm:$0xf] %v516
          %533 = vst [vmem:[%s273 + $0xc] sm:$0xf] %v517
          %534 = vst [vmem:[%s273 + $0x10] sm:$0xf] %v518
          %535 = vst [vmem:[%s273 + $0x14] sm:$0xf] %v519
          %536 = vst [vmem:[%s273 + $0x18] sm:$0xf] %v520
          %537 = vst [vmem:[%s273 + $0x1c] sm:$0xf] %v521
          %v538 = vadd.f32 %v490, %v491
          %v539 = vadd.f32 %v538, %v492
          %v540 = vadd.f32 %v539, %v493
          %v541 = vadd.f32 %v540, %v494
          %v542 = vadd.f32 %v541, %v495
          %v543 = vadd.f32 %v542, %v496
          %v544 = vadd.f32 %v543, %v497
          %v545 = vrot.slane %v544, 4
          %v546 = vadd.f32 %v544, %v545
          %v547 = vrot.slane %v546, 2
          %v548 = vadd.f32 %v546, %v547
          %v549 = vrot.slane %v548, 1
          %v550 = vadd.f32 %v548, %v549
          %551 = vst [vmem:[%s279] sm:$0x1] %v550
          %v552 = vmul.f32 %v490, %v490
          %v553 = vmul.f32 %v491, %v491
          %v554 = vmul.f32 %v492, %v492
          %v555 = vmul.f32 %v493, %v493
          %v556 = vmul.f32 %v494, %v494
          %v557 = vmul.f32 %v495, %v495
          %v558 = vmul.f32 %v496, %v496
          %v559 = vmul.f32 %v497, %v497
          %v560 = vadd.f32 %v552, %v553
          %v561 = vadd.f32 %v560, %v554
          %v562 = vadd.f32 %v561, %v555
          %v563 = vadd.f32 %v562, %v556
          %v564 = vadd.f32 %v563, %v557
          %v565 = vadd.f32 %v564, %v558
          %v566 = vadd.f32 %v565, %v559
          %v567 = vrot.slane %v566, 4
          %v568 = vadd.f32 %v566, %v567
          %v569 = vrot.slane %v568, 2
          %v570 = vadd.f32 %v568, %v569
          %v571 = vrot.slane %v570, 1
          %v572 = vadd.f32 %v570, %v571
          %573 = vst [vmem:[%s285] sm:$0x1] %v572
        $region44: #{tpu_custom_call.1} parent=27 // pred_fallthru
          _
        %s574 = sand.u32 %s111, 1
        %s575 = scalar_lea.sflag [#allocation5], %s574
        %s576 = sand.u32 %s111, 1
        %s577 = smul.addr %s576, 32
        %s578 = scalar_lea.vmem [#allocation8], %s577
        %s579 = sand.u32 %s26, 1
        %s580 = scalar_lea.sflag [#allocation10], %s579
        %s581 = sand.u32 %s139, 1
        %s582 = scalar_lea.vmem [#allocation9], %s581
        %s583 = sand.u32 %s26, 1
        %s584 = scalar_lea.sflag [#allocation10], %s583
        %s585 = sand.u32 %s167, 1
        %s586 = scalar_lea.vmem [#allocation11], %s585
        // Predicated region
        $region45: #{tpu_custom_call.1} parent=27 // pred_check
          %p587 = pneg %p121
        $region46: #{tpu_custom_call.1} parent=27 // pred_check_branch
          %589 = sbr.rel (%p587) target = $region48
        $region47: #{tpu_custom_call.1} parent=27 // pred_region
          %s590 = smul.u32 8, %s31
          %s592 = ssub.s32 512, 512
          %593 = vsyncadd %s575, %s592
          %s594 = sadd.s32 %s32, %s590
          %s595 = smul.addr %s594, 64
          %s596 = scalar_lea.hbm %s2, %s595
          %s597 = sshll.u32 %s578, 4
          %s598 = int_to_ptr.vmem [resolvable:$true] %s597
          %603 = dma.vmem_to_hbm [thread:$0]  %s598, 512, %s596, %s575, 64, 64, 4
        $region48: #{tpu_custom_call.1} parent=27 // pred_fallthru
          _
        // Predicated region
        $region49: #{tpu_custom_call.1} parent=27 // pred_check
          %p604 = pneg %p149
        $region50: #{tpu_custom_call.1} parent=27 // pred_check_branch
          %606 = sbr.rel (%p604) target = $region52
        $region51: #{tpu_custom_call.1} parent=27 // pred_region
          %s608 = ssub.s32 16, 16
          %609 = vsyncadd %s580, %s608
          %s610 = sadd.s32 %s32, %s31
          %s611 = smul.addr %s610, 16
          %s612 = scalar_lea.hbm %s3, %s611
          %s614 = sshll.u32 %s582, 4
          %s615 = int_to_ptr.vmem [resolvable:$true] %s614
          %617 = dma.vmem_to_hbm [thread:$0]  %s615, 16, %s612, %s580
        $region52: #{tpu_custom_call.1} parent=27 // pred_fallthru
          _
        // Predicated region
        $region53: #{tpu_custom_call.1} parent=27 // pred_check
          %p618 = pneg %p177
        $region54: #{tpu_custom_call.1} parent=27 // pred_check_branch
          %620 = sbr.rel (%p618) target = $region56
        $region55: #{tpu_custom_call.1} parent=27 // pred_region
          %s622 = ssub.s32 16, 16
          %623 = vsyncadd %s584, %s622
          %s624 = sadd.s32 %s32, %s31
          %s625 = smul.addr %s624, 16
          %s626 = scalar_lea.hbm %s4, %s625
          %s628 = sshll.u32 %s586, 4
          %s629 = int_to_ptr.vmem [resolvable:$true] %s628
          %631 = dma.vmem_to_hbm [thread:$0]  %s629, 16, %s626, %s584
        $region56: #{tpu_custom_call.1} parent=27 // pred_fallthru
          _
      $region28: #{tpu_custom_call.1} parent=5 // pred_fallthru
        _
      %p632 = scmp.le.s32.totalorder 2, %s21
      // Predicated region
      $region57: #{tpu_custom_call.1} parent=5 // pred_check
        %p633 = pneg %p632
      $region58: #{tpu_custom_call.1} parent=5 // pred_check_branch
        %635 = sbr.rel (%p633) target = $region60
      $region59: #{tpu_custom_call.1} parent=5 // pred_region
        %s636 = ssub.s32 %s21, 2
        // Predicated region
        $region61: #{tpu_custom_call.1} parent=59 // pred_check
          %p637 = pneg %p127
        $region62: #{tpu_custom_call.1} parent=59 // pred_check_branch
          %639 = sbr.rel (%p637) target = $region64
        $region63: #{tpu_custom_call.1} parent=59 // pred_region
          %s640 = sand.u32 %s112, 1
          %s641 = scalar_lea.sflag [#allocation5], %s640
          %s642 = sand.u32 %s112, 1
          %s643 = smul.addr %s642, 32
          %s644 = scalar_lea.vmem [#allocation8], %s643
          %645 = dma.done %s641, 512
        $region64: #{tpu_custom_call.1} parent=59 // pred_fallthru
          _
        // Predicated region
        $region65: #{tpu_custom_call.1} parent=59 // pred_check
          %p646 = pneg %p155
        $region66: #{tpu_custom_call.1} parent=59 // pred_check_branch
          %648 = sbr.rel (%p646) target = $region68
        $region67: #{tpu_custom_call.1} parent=59 // pred_region
          %s649 = sand.u32 %s27, 1
          %s650 = scalar_lea.sflag [#allocation10], %s649
          %s651 = sand.u32 %s140, 1
          %s652 = scalar_lea.vmem [#allocation9], %s651
          %653 = dma.done %s650, 16
        $region68: #{tpu_custom_call.1} parent=59 // pred_fallthru
          _
        // Predicated region
        $region69: #{tpu_custom_call.1} parent=59 // pred_check
          %p654 = pneg %p183
        $region70: #{tpu_custom_call.1} parent=59 // pred_check_branch
          %656 = sbr.rel (%p654) target = $region72
        $region71: #{tpu_custom_call.1} parent=59 // pred_region
          %s657 = sand.u32 %s27, 1
          %s658 = scalar_lea.sflag [#allocation10], %s657
          %s659 = sand.u32 %s168, 1
          %s660 = scalar_lea.vmem [#allocation11], %s659
          %661 = dma.done %s658, 16
        $region72: #{tpu_custom_call.1} parent=59 // pred_fallthru
          _
      $region60: #{tpu_custom_call.1} parent=5 // pred_fallthru
        _
    $region6: #{tpu_custom_call.1} parent=1 // loop_footer
      %s25 = sadd.s32 1, %s21
    $region7: #{tpu_custom_call.1} parent=1 // loop_footer_branch
      %20 = sbr.rel target = $region3
    $region8: #{tpu_custom_call.1} parent=1 // loop_exit
      _
    %662 = vsyncpa [#allocation4], 1
    %s663 = scalar_lea.sflag [#allocation4], 1
    %664 = vsyncpa %s663, 1
    %665 = vsyncpa [#allocation7], 1
    %666 = vsyncpa [#allocation5], 1
    %s667 = scalar_lea.sflag [#allocation5], 1
    %668 = vsyncpa %s667, 1
    %669 = vsyncpa [#allocation10], 1
    %s670 = scalar_lea.sflag [#allocation10], 1
    %671 = vsyncpa %s670, 1

</llo_original>
